<compile_context>
chip_gen: v7x
topology: tpu7x:2x2x1
jax: 0.10.0
libtpu: 0.0.40
codegen_flags: <defaults>
</compile_context>

<pallas_src>
import functools
import math

import jax
import jax.numpy as jnp
from jax import lax
from jax.experimental import pallas as pl
from jax.experimental.pallas import tpu as pltpu


def _make_kernel(num_heads, has_mask):
    """Kernel factory; `has_mask` selects the variant with/without the mask operand."""
    f32 = jnp.float32

    def kernel(q_ref, k_ref, v_ref, *rest):
        if has_mask:
            (mask_ref, wq_ref, wk_ref, wv_ref, wo_ref,
             bq_ref, bk_ref, bv_ref, bo_ref, optw_ref, o_ref) = rest
        else:
            mask_ref = None
            (wq_ref, wk_ref, wv_ref, wo_ref,
             bq_ref, bk_ref, bv_ref, bo_ref, optw_ref, o_ref) = rest

        Bb, L, D = q_ref.shape
        S = k_ref.shape[1]

        def proj(x_ref, w_ref, b_ref, rows):
            # PyTorch Linear: x @ W^T + b, done for the whole block in ONE matmul
            # (batch folded into the M dimension).  Leading-dim-only reshapes.
            x2 = x_ref[...].reshape(rows, D).astype(f32)
            y = lax.dot_general(x2, w_ref[...].astype(f32),
                                (((1,), (1,)), ((), ())),
                                preferred_element_type=f32)
            return y + b_ref[...]

        # 1/sqrt(head_dim) is already folded into W_q / b_q by the wrapper.
        q = proj(q_ref, wq_ref, bq_ref, Bb * L).reshape(Bb, L, D)
        k = proj(k_ref, wk_ref, bk_ref, Bb * S).reshape(Bb, S, D)
        v = proj(v_ref, wv_ref, bv_ref, Bb * S).reshape(Bb, S, D)

        if num_heads == 1:
            # Single head: standard batched matmul attention on the MXU.
            s = lax.dot_general(q, k, (((2,), (2,)), ((0,), (0,))),
                                preferred_element_type=f32)            # (Bb, L, S)
            if has_mask:
                s = s + mask_ref[...][None, :, :]
            m = jnp.max(s, axis=-1, keepdims=True)
            p = jnp.exp(s - m)
            p = p * pl.reciprocal(jnp.sum(p, axis=-1, keepdims=True), approx=True)
            ctx = lax.dot_general(p, v, (((2,), (1,)), ((0,), (0,))),
                                  preferred_element_type=f32)          # (Bb, L, D)
        else:
            # num_heads == d_model -> head_dim == 1: per-head scores are rank-1
            # outer products.  Compute ALL heads at once with broadcast multiplies
            # (no K=1 padded MXU ops, no 1-lane column slices/stores).
            s = q[:, :, None, :] * k[:, None, :, :]                    # (Bb, L, S, H)
            if has_mask:
                s = s + mask_ref[...][None, :, :, None]
            m = jnp.max(s, axis=2, keepdims=True)
            p = jnp.exp(s - m)
            p = p * pl.reciprocal(jnp.sum(p, axis=2, keepdims=True), approx=True)
            ctx = jnp.sum(p * v[:, None, :, :], axis=2)                # (Bb, L, D=H)

        # Output projection + "optimation" per-head reweighting.
        ctx2 = ctx.reshape(Bb * L, D)
        out = lax.dot_general(ctx2, wo_ref[...].astype(f32),
                              (((1,), (1,)), ((), ())),
                              preferred_element_type=f32) + bo_ref[...]
        out = out * optw_ref[...]          # (Bb*L, D) * (1, H); H == D or H == 1
        o_ref[...] = out.reshape(Bb, L, D).astype(o_ref.dtype)

    return kernel


def optimated_multihead_attention(query, key, value, params, num_heads,
                                  attn_mask=None, block_b=None):
    """Pallas wrapper.  params = (wq, wk, wv, wo, bq, bk, bv, bo, opt_w)."""
    wq, wk, wv, wo, bq, bk, bv, bo, opt_w = params
    B, L, D = query.shape
    S = key.shape[1]

    assert D % num_heads == 0
    # The PyTorch module's `out * optimation_weights.view(1,1,num_heads)` only
    # broadcasts when num_heads == d_model (head_dim == 1) or num_heads == 1.
    assert num_heads in (D, 1), "optimation_weights broadcast requires num_heads in {d_model, 1}"

    hd = D // num_heads
    scale = 1.0 / math.sqrt(hd)
    f32 = jnp.float32

    # Fold softmax scale into the query projection at trace time.
    wq_s = (wq * scale).astype(f32)
    bq_s = (bq * scale).astype(f32)
    weights = [wq_s, wk.astype(f32), wv.astype(f32), wo.astype(f32)]
    biases = [bq_s.reshape(1, D), bk.reshape(1, D).astype(f32),
              bv.reshape(1, D).astype(f32), bo.reshape(1, D).astype(f32)]
    optw2 = opt_w.reshape(1, num_heads).astype(f32)

    if block_b is None:
        # Fold the whole batch into one grid step at toy sizes (per-step overhead
        # dominates); larger problems fall back to one batch per step, which also
        # keeps >= 2 parallel grid steps for v7x's two TensorCores.
        block_b = B if B * (L + 2 * S) * D * 4 <= (2 << 20) else 1
    assert B % block_b == 0
    grid = (B // block_b,)

    has_mask = attn_mask is not None
    operands = [query, key, value]
    in_specs = [
        pl.BlockSpec((block_b, L, D), lambda i: (i, 0, 0)),   # query
        pl.BlockSpec((block_b, S, D), lambda i: (i, 0, 0)),   # key
        pl.BlockSpec((block_b, S, D), lambda i: (i, 0, 0)),   # value
    ]
    if has_mask:
        operands.append(attn_mask.astype(f32).reshape(L, S))
        in_specs.append(pl.BlockSpec((L, S), lambda i: (0, 0)))
    operands += weights + biases + [optw2]
    in_specs += [pl.BlockSpec((D, D), lambda i: (0, 0))] * 4          # W_q W_k W_v W_o
    in_specs += [pl.BlockSpec((1, D), lambda i: (0, 0))] * 4          # b_q b_k b_v b_o
    in_specs += [pl.BlockSpec((1, num_heads), lambda i: (0, 0))]      # optimation weights

    kernel = _make_kernel(num_heads, has_mask)

    return pl.pallas_call(
        kernel,
        out_shape=jax.ShapeDtypeStruct((B, L, D), query.dtype),
        grid_spec=pltpu.PrefetchScalarGridSpec(
            num_scalar_prefetch=0,
            grid=grid,
            in_specs=in_specs,
            out_specs=pl.BlockSpec((block_b, L, D), lambda i: (i, 0, 0)),
        ),
        compiler_params=pltpu.CompilerParams(
            dimension_semantics=("parallel",)),
    )(*operands)


def reference(query, key, value, params, num_heads, attn_mask=None):
    """Pure-JAX reference of the PyTorch forward (eval-mode dropout)."""
    wq, wk, wv, wo, bq, bk, bv, bo, opt_w = params
    B, L, D = query.shape
    S = key.shape[1]
    hd = D // num_heads
    q = query @ wq.T + bq
    k = key @ wk.T + bk
    v = value @ wv.T + bv
    q = q.reshape(B, L, num_heads, hd).transpose(0, 2, 1, 3)
    k = k.reshape(B, S, num_heads, hd).transpose(0, 2, 1, 3)
    v = v.reshape(B, S, num_heads, hd).transpose(0, 2, 1, 3)
    s = jnp.einsum('bhld,bhsd->bhls', q, k) / math.sqrt(hd)
    if attn_mask is not None:
        s = s + attn_mask
    p = jax.nn.softmax(s, axis=-1)
    ctx = jnp.einsum('bhls,bhsd->bhld', p, v)
    ctx = ctx.transpose(0, 2, 1, 3).reshape(B, L, D)
    out = ctx @ wo.T + bo
    return out * opt_w.reshape(1, 1, -1)


if __name__ == "__main__":
    # Shapes implied by the forward: batch=2, seq=8, d_model=num_heads=8
    # (the optimation_weights broadcast in the PyTorch code requires d_model == num_heads).
    B, L, S = 2, 8, 8
    d_model, num_heads = 8, 8

    key0 = jax.random.PRNGKey(0)
    k_inp, k_outp, k_q, k_k, k_v = jax.random.split(key0, 5)

    # Deterministic parameter init (xavier-uniform-style weights, zero biases,
    # optimation_weights = ones / num_heads — matching nn module defaults).
    bound = math.sqrt(6.0 / (2 * d_model))
    in_proj_w = jax.random.uniform(k_inp, (3 * d_model, d_model), jnp.float32,
                                   -bound, bound)
    in_proj_b = jnp.zeros((3 * d_model,), jnp.float32)
    wq, wk, wv = (in_proj_w[0:d_model],
                  in_proj_w[d_model:2 * d_model],
                  in_proj_w[2 * d_model:3 * d_model])
    bq, bk, bv = (in_proj_b[0:d_model],
                  in_proj_b[d_model:2 * d_model],
                  in_proj_b[2 * d_model:3 * d_model])
    wo = jax.random.uniform(k_outp, (d_model, d_model), jnp.float32, -bound, bound)
    bo = jnp.zeros((d_model,), jnp.float32)
    opt_w = jnp.ones((num_heads,), jnp.float32) / num_heads

    params = (wq, wk, wv, wo, bq, bk, bv, bo, opt_w)

    query = jax.random.normal(k_q, (B, L, d_model), jnp.float32)
    key = jax.random.normal(k_k, (B, S, d_model), jnp.float32)
    value = jax.random.normal(k_v, (B, S, d_model), jnp.float32)

    # No-mask path (no mask operand DMA'd, mask-less kernel variant).
    out = optimated_multihead_attention(query, key, value, params, num_heads,
                                        attn_mask=None)
    jax.block_until_ready(out)
    ref = reference(query, key, value, params, num_heads, attn_mask=None)
    assert out.shape == (B, L, d_model)
    assert jnp.allclose(out, ref, atol=2e-3, rtol=2e-3), \
        f"max abs diff (no mask) {jnp.max(jnp.abs(out - ref))}"

    # Additive (causal) mask path.
    causal = jnp.where(jnp.tril(jnp.ones((L, S), bool)), 0.0, -1e9).astype(jnp.float32)
    out_m = optimated_multihead_attention(query, key, value, params, num_heads,
                                          attn_mask=causal)
    jax.block_until_ready(out_m)
    ref_m = reference(query, key, value, params, num_heads, attn_mask=causal)
    assert jnp.allclose(out_m, ref_m, atol=2e-3, rtol=2e-3), \
        f"max abs diff (mask) {jnp.max(jnp.abs(out_m - ref_m))}"

    print("KERNEL_OK")
</pallas_src>

<mosaic_0001>
module attributes {stable_mosaic.version = 11 : i64} {
  func.func @kernel(%arg0: i32, %arg1: memref<2x8x8xf32, #tpu.memory_space<vmem>>, %arg2: memref<2x8x8xf32, #tpu.memory_space<vmem>>, %arg3: memref<2x8x8xf32, #tpu.memory_space<vmem>>, %arg4: memref<8x8xf32, #tpu.memory_space<vmem>>, %arg5: memref<8x8xf32, #tpu.memory_space<vmem>>, %arg6: memref<8x8xf32, #tpu.memory_space<vmem>>, %arg7: memref<8x8xf32, #tpu.memory_space<vmem>>, %arg8: memref<1x8xf32, #tpu.memory_space<vmem>>, %arg9: memref<1x8xf32, #tpu.memory_space<vmem>>, %arg10: memref<1x8xf32, #tpu.memory_space<vmem>>, %arg11: memref<1x8xf32, #tpu.memory_space<vmem>>, %arg12: memref<1x8xf32, #tpu.memory_space<vmem>>, %arg13: memref<2x8x8xf32, #tpu.memory_space<vmem>>) attributes {dimension_semantics = [#tpu.dimension_semantics<parallel>], iteration_bounds = array<i64: 1>, scalar_prefetch = 0 : i64, scratch_operands = 0 : i64, tpu.core_type = #tpu.core_type<tc>, window_params = [{transform_indices = @transform_0, window_bounds = array<i64: 2, 8, 8>}, {transform_indices = @transform_1, window_bounds = array<i64: 2, 8, 8>}, {transform_indices = @transform_2, window_bounds = array<i64: 2, 8, 8>}, {pipeline_mode = #tpu.pipeline_mode<synchronous>, transform_indices = @transform_3, window_bounds = array<i64: 8, 8>}, {pipeline_mode = #tpu.pipeline_mode<synchronous>, transform_indices = @transform_4, window_bounds = array<i64: 8, 8>}, {pipeline_mode = #tpu.pipeline_mode<synchronous>, transform_indices = @transform_5, window_bounds = array<i64: 8, 8>}, {pipeline_mode = #tpu.pipeline_mode<synchronous>, transform_indices = @transform_6, window_bounds = array<i64: 8, 8>}, {pipeline_mode = #tpu.pipeline_mode<synchronous>, transform_indices = @transform_7, window_bounds = array<i64: 1, 8>}, {pipeline_mode = #tpu.pipeline_mode<synchronous>, transform_indices = @transform_8, window_bounds = array<i64: 1, 8>}, {pipeline_mode = #tpu.pipeline_mode<synchronous>, transform_indices = @transform_9, window_bounds = array<i64: 1, 8>}, {pipeline_mode = #tpu.pipeline_mode<synchronous>, transform_indices = @transform_10, window_bounds = array<i64: 1, 8>}, {pipeline_mode = #tpu.pipeline_mode<synchronous>, transform_indices = @transform_11, window_bounds = array<i64: 1, 8>}, {transform_indices = @transform_12, window_bounds = array<i64: 2, 8, 8>}]} {
    %c0 = arith.constant 0 : index
    %c0_0 = arith.constant 0 : index
    %c0_1 = arith.constant 0 : index
    %0 = vector.load %arg1[%c0, %c0_0, %c0_1] : memref<2x8x8xf32, #tpu.memory_space<vmem>>, vector<2x8x8xf32>
    %1 = vector.shape_cast %0 : vector<2x8x8xf32> to vector<16x8xf32>
    %c0_2 = arith.constant 0 : index
    %c0_3 = arith.constant 0 : index
    %2 = vector.load %arg4[%c0_2, %c0_3] : memref<8x8xf32, #tpu.memory_space<vmem>>, vector<8x8xf32>
    %cst = arith.constant dense<0.000000e+00> : vector<16x8xf32>
    %3 = tpu.matmul %1, %2, %cst {dimension_numbers = #tpu.dot_dimension_numbers<[1], [1], [0], [0], [0, 0, 1, 0], [], []>} : vector<16x8xf32>, vector<8x8xf32>, vector<16x8xf32> -> vector<16x8xf32>
    %c0_4 = arith.constant 0 : index
    %c0_5 = arith.constant 0 : index
    %4 = vector.load %arg8[%c0_4, %c0_5] : memref<1x8xf32, #tpu.memory_space<vmem>>, vector<1x8xf32>
    %5 = vector.broadcast %4 : vector<1x8xf32> to vector<16x8xf32>
    %6 = arith.addf %3, %5 : vector<16x8xf32>
    %7 = vector.shape_cast %6 : vector<16x8xf32> to vector<2x8x8xf32>
    %c0_6 = arith.constant 0 : index
    %c0_7 = arith.constant 0 : index
    %c0_8 = arith.constant 0 : index
    %8 = vector.load %arg2[%c0_6, %c0_7, %c0_8] : memref<2x8x8xf32, #tpu.memory_space<vmem>>, vector<2x8x8xf32>
    %9 = vector.shape_cast %8 : vector<2x8x8xf32> to vector<16x8xf32>
    %c0_9 = arith.constant 0 : index
    %c0_10 = arith.constant 0 : index
    %10 = vector.load %arg5[%c0_9, %c0_10] : memref<8x8xf32, #tpu.memory_space<vmem>>, vector<8x8xf32>
    %cst_11 = arith.constant dense<0.000000e+00> : vector<16x8xf32>
    %11 = tpu.matmul %9, %10, %cst_11 {dimension_numbers = #tpu.dot_dimension_numbers<[1], [1], [0], [0], [0, 0, 1, 0], [], []>} : vector<16x8xf32>, vector<8x8xf32>, vector<16x8xf32> -> vector<16x8xf32>
    %c0_12 = arith.constant 0 : index
    %c0_13 = arith.constant 0 : index
    %12 = vector.load %arg9[%c0_12, %c0_13] : memref<1x8xf32, #tpu.memory_space<vmem>>, vector<1x8xf32>
    %13 = vector.broadcast %12 : vector<1x8xf32> to vector<16x8xf32>
    %14 = arith.addf %11, %13 : vector<16x8xf32>
    %15 = vector.shape_cast %14 : vector<16x8xf32> to vector<2x8x8xf32>
    %c0_14 = arith.constant 0 : index
    %c0_15 = arith.constant 0 : index
    %c0_16 = arith.constant 0 : index
    %16 = vector.load %arg3[%c0_14, %c0_15, %c0_16] : memref<2x8x8xf32, #tpu.memory_space<vmem>>, vector<2x8x8xf32>
    %17 = vector.shape_cast %16 : vector<2x8x8xf32> to vector<16x8xf32>
    %c0_17 = arith.constant 0 : index
    %c0_18 = arith.constant 0 : index
    %18 = vector.load %arg6[%c0_17, %c0_18] : memref<8x8xf32, #tpu.memory_space<vmem>>, vector<8x8xf32>
    %cst_19 = arith.constant dense<0.000000e+00> : vector<16x8xf32>
    %19 = tpu.matmul %17, %18, %cst_19 {dimension_numbers = #tpu.dot_dimension_numbers<[1], [1], [0], [0], [0, 0, 1, 0], [], []>} : vector<16x8xf32>, vector<8x8xf32>, vector<16x8xf32> -> vector<16x8xf32>
    %c0_20 = arith.constant 0 : index
    %c0_21 = arith.constant 0 : index
    %20 = vector.load %arg10[%c0_20, %c0_21] : memref<1x8xf32, #tpu.memory_space<vmem>>, vector<1x8xf32>
    %21 = vector.broadcast %20 : vector<1x8xf32> to vector<16x8xf32>
    %22 = arith.addf %19, %21 : vector<16x8xf32>
    %23 = vector.shape_cast %22 : vector<16x8xf32> to vector<2x8x8xf32>
    %24 = vector.shape_cast %7 : vector<2x8x8xf32> to vector<2x8x1x8xf32>
    %25 = vector.shape_cast %15 : vector<2x8x8xf32> to vector<2x1x8x8xf32>
    %26 = vector.broadcast %24 : vector<2x8x1x8xf32> to vector<2x8x8x8xf32>
    %27 = vector.broadcast %25 : vector<2x1x8x8xf32> to vector<2x8x8x8xf32>
    %28 = arith.mulf %26, %27 : vector<2x8x8x8xf32>
    %cst_22 = arith.constant dense<0xFF800000> : vector<2x8x8xf32>
    %29 = vector.multi_reduction <maximumf>, %28, %cst_22 [2] : vector<2x8x8x8xf32> to vector<2x8x8xf32>
    %30 = vector.shape_cast %29 : vector<2x8x8xf32> to vector<2x8x1x8xf32>
    %31 = vector.broadcast %30 : vector<2x8x1x8xf32> to vector<2x8x8x8xf32>
    %32 = arith.subf %28, %31 : vector<2x8x8x8xf32>
    %33 = math.exp %32 : vector<2x8x8x8xf32>
    %cst_23 = arith.constant dense<0.000000e+00> : vector<2x8x8xf32>
    %34 = vector.multi_reduction <add>, %33, %cst_23 [2] : vector<2x8x8x8xf32> to vector<2x8x8xf32>
    %35 = vector.shape_cast %34 : vector<2x8x8xf32> to vector<2x8x1x8xf32>
    %36 = tpu.reciprocal %35 {approx = true} : vector<2x8x1x8xf32> -> vector<2x8x1x8xf32>
    %37 = vector.broadcast %36 : vector<2x8x1x8xf32> to vector<2x8x8x8xf32>
    %38 = arith.mulf %33, %37 : vector<2x8x8x8xf32>
    %39 = vector.shape_cast %23 : vector<2x8x8xf32> to vector<2x1x8x8xf32>
    %40 = vector.broadcast %39 : vector<2x1x8x8xf32> to vector<2x8x8x8xf32>
    %41 = arith.mulf %38, %40 : vector<2x8x8x8xf32>
    %cst_24 = arith.constant dense<0.000000e+00> : vector<2x8x8xf32>
    %42 = vector.multi_reduction <add>, %41, %cst_24 [2] : vector<2x8x8x8xf32> to vector<2x8x8xf32>
    %43 = vector.shape_cast %42 : vector<2x8x8xf32> to vector<16x8xf32>
    %c0_25 = arith.constant 0 : index
    %c0_26 = arith.constant 0 : index
    %44 = vector.load %arg7[%c0_25, %c0_26] : memref<8x8xf32, #tpu.memory_space<vmem>>, vector<8x8xf32>
    %cst_27 = arith.constant dense<0.000000e+00> : vector<16x8xf32>
    %45 = tpu.matmul %43, %44, %cst_27 {dimension_numbers = #tpu.dot_dimension_numbers<[1], [1], [0], [0], [0, 0, 1, 0], [], []>} : vector<16x8xf32>, vector<8x8xf32>, vector<16x8xf32> -> vector<16x8xf32>
    %c0_28 = arith.constant 0 : index
    %c0_29 = arith.constant 0 : index
    %46 = vector.load %arg11[%c0_28, %c0_29] : memref<1x8xf32, #tpu.memory_space<vmem>>, vector<1x8xf32>
    %47 = vector.broadcast %46 : vector<1x8xf32> to vector<16x8xf32>
    %48 = arith.addf %45, %47 : vector<16x8xf32>
    %c0_30 = arith.constant 0 : index
    %c0_31 = arith.constant 0 : index
    %49 = vector.load %arg12[%c0_30, %c0_31] : memref<1x8xf32, #tpu.memory_space<vmem>>, vector<1x8xf32>
    %50 = vector.broadcast %49 : vector<1x8xf32> to vector<16x8xf32>
    %51 = arith.mulf %48, %50 : vector<16x8xf32>
    %52 = vector.shape_cast %51 : vector<16x8xf32> to vector<2x8x8xf32>
    %c0_32 = arith.constant 0 : index
    %c0_33 = arith.constant 0 : index
    %c0_34 = arith.constant 0 : index
    %53 = vector.load %arg13[%c0_32, %c0_33, %c0_34] : memref<2x8x8xf32, #tpu.memory_space<vmem>>, vector<2x8x8xf32>
    tpu.vector_store %arg13[%c0_32, %c0_33, %c0_34], %52 {strides = array<i32>} : memref<2x8x8xf32, #tpu.memory_space<vmem>>, vector<2x8x8xf32>,
    return
  }
  func.func @transform_0(%arg0: i32) -> (i32, i32, i32) {
    %c0_i32 = arith.constant 0 : i32
    %c0_i32_0 = arith.constant 0 : i32
    %c0_i32_1 = arith.constant 0 : i32
    return %arg0, %c0_i32, %c0_i32_0 : i32, i32, i32
  }
  func.func @transform_1(%arg0: i32) -> (i32, i32, i32) {
    %c0_i32 = arith.constant 0 : i32
    %c0_i32_0 = arith.constant 0 : i32
    %c0_i32_1 = arith.constant 0 : i32
    return %arg0, %c0_i32, %c0_i32_0 : i32, i32, i32
  }
  func.func @transform_2(%arg0: i32) -> (i32, i32, i32) {
    %c0_i32 = arith.constant 0 : i32
    %c0_i32_0 = arith.constant 0 : i32
    %c0_i32_1 = arith.constant 0 : i32
    return %arg0, %c0_i32, %c0_i32_0 : i32, i32, i32
  }
  func.func @transform_3(%arg0: i32) -> (i32, i32) {
    %c0_i32 = arith.constant 0 : i32
    %c0_i32_0 = arith.constant 0 : i32
    %c0_i32_1 = arith.constant 0 : i32
    return %c0_i32, %c0_i32_0 : i32, i32
  }
  func.func @transform_4(%arg0: i32) -> (i32, i32) {
    %c0_i32 = arith.constant 0 : i32
    %c0_i32_0 = arith.constant 0 : i32
    %c0_i32_1 = arith.constant 0 : i32
    return %c0_i32, %c0_i32_0 : i32, i32
  }
  func.func @transform_5(%arg0: i32) -> (i32, i32) {
    %c0_i32 = arith.constant 0 : i32
    %c0_i32_0 = arith.constant 0 : i32
    %c0_i32_1 = arith.constant 0 : i32
    return %c0_i32, %c0_i32_0 : i32, i32
  }
  func.func @transform_6(%arg0: i32) -> (i32, i32) {
    %c0_i32 = arith.constant 0 : i32
    %c0_i32_0 = arith.constant 0 : i32
    %c0_i32_1 = arith.constant 0 : i32
    return %c0_i32, %c0_i32_0 : i32, i32
  }
  func.func @transform_7(%arg0: i32) -> (i32, i32) {
    %c0_i32 = arith.constant 0 : i32
    %c0_i32_0 = arith.constant 0 : i32
    %c0_i32_1 = arith.constant 0 : i32
    return %c0_i32, %c0_i32_0 : i32, i32
  }
  func.func @transform_8(%arg0: i32) -> (i32, i32) {
    %c0_i32 = arith.constant 0 : i32
    %c0_i32_0 = arith.constant 0 : i32
    %c0_i32_1 = arith.constant 0 : i32
    return %c0_i32, %c0_i32_0 : i32, i32
  }
  func.func @transform_9(%arg0: i32) -> (i32, i32) {
    %c0_i32 = arith.constant 0 : i32
    %c0_i32_0 = arith.constant 0 : i32
    %c0_i32_1 = arith.constant 0 : i32
    return %c0_i32, %c0_i32_0 : i32, i32
  }
  func.func @transform_10(%arg0: i32) -> (i32, i32) {
    %c0_i32 = arith.constant 0 : i32
    %c0_i32_0 = arith.constant 0 : i32
    %c0_i32_1 = arith.constant 0 : i32
    return %c0_i32, %c0_i32_0 : i32, i32
  }
  func.func @transform_11(%arg0: i32) -> (i32, i32) {
    %c0_i32 = arith.constant 0 : i32
    %c0_i32_0 = arith.constant 0 : i32
    %c0_i32_1 = arith.constant 0 : i32
    return %c0_i32, %c0_i32_0 : i32, i32
  }
  func.func @transform_12(%arg0: i32) -> (i32, i32, i32) {
    %c0_i32 = arith.constant 0 : i32
    %c0_i32_0 = arith.constant 0 : i32
    %c0_i32_1 = arith.constant 0 : i32
    return %arg0, %c0_i32, %c0_i32_0 : i32, i32, i32
  }
}

</mosaic_0001>

<llo_original>
// kernel: tpu_custom_call.1
$region0: #{tpu_custom_call.1}
  #allocation0 [shape = 'u32[]', space=smem, size = 0x4, offset = 0x4, fixed_abs, tag = 'smem constant byte address 0x4 - core index']
  #allocation1 [shape = 'u32[144,128]{1,0:T(1,128)}', space=vmem, size = 0x12000, scoped, tag = 'internal scratch']
  %s0 = inlined_call_operand.hbm [shape: f32[2,8,8], index: 0, kind: input, shape index: {}]
  %s1 = inlined_call_operand.hbm [shape: f32[2,8,8], index: 1, kind: input, shape index: {}]
  %s2 = inlined_call_operand.hbm [shape: f32[2,8,8], index: 2, kind: input, shape index: {}]
  %s3 = inlined_call_operand.vmem [shape: f32[8,8], index: 3, kind: input, shape index: {}]
  %s4 = inlined_call_operand.hbm [shape: f32[8,8], index: 4, kind: input, shape index: {}]
  %s5 = inlined_call_operand.vmem [shape: f32[8,8], index: 5, kind: input, shape index: {}]
  %s6 = inlined_call_operand.hbm [shape: f32[8,8], index: 6, kind: input, shape index: {}]
  %s7 = inlined_call_operand.vmem [shape: f32[1,8], index: 7, kind: input, shape index: {}]
  %s8 = inlined_call_operand.vmem [shape: f32[1,8], index: 8, kind: input, shape index: {}]
  %s9 = inlined_call_operand.vmem [shape: f32[1,8], index: 9, kind: input, shape index: {}]
  %s10 = inlined_call_operand.vmem [shape: f32[1,8], index: 10, kind: input, shape index: {}]
  %s11 = inlined_call_operand.vmem [shape: f32[1,8], index: 11, kind: input, shape index: {}]
  %s12 = inlined_call_operand.hbm [shape: f32[2,8,8], index: 12, kind: output, shape index: {}]
  %s13 = sld [smem:[#allocation0]]
  $region78: #{tpu_custom_call.1} parent=0
    _
  %s15 = ssub.s32 1, %s13
  %s16 = scalar_select 0, %s15, %s13
  $region1: #{tpu_custom_call.1} parent=0
    #allocation2 [shape = 'u8[8192]{0}', space=vmem, size = 0x2000, scoped, tag = 'input window, operand 0, single buffered']
    #allocation3 [shape = 's32[1]{0}', space=sflag, size = 0x4, scoped, tag = 'scoped memory for tpu_custom_call.1']
    #allocation4 [shape = 's32[1]{0}', space=sflag, size = 0x4, scoped, tag = 'scoped memory for tpu_custom_call.1']
    #allocation5 [shape = 'u8[8192]{0}', space=vmem, size = 0x2000, scoped, tag = 'input window, operand 1, single buffered']
    #allocation6 [shape = 's32[1]{0}', space=sflag, size = 0x4, scoped, tag = 'scoped memory for tpu_custom_call.1']
    #allocation7 [shape = 'u8[8192]{0}', space=vmem, size = 0x2000, scoped, tag = 'input window, operand 2, single buffered']
    #allocation8 [shape = 'u8[4096]{0}', space=vmem, size = 0x1000, scoped, tag = 'input window, operand 4, single buffered']
    #allocation9 [shape = 's32[1]{0}', space=sflag, size = 0x4, scoped, tag = 'scoped memory for tpu_custom_call.1']
    #allocation10 [shape = 'u8[4096]{0}', space=vmem, size = 0x1000, scoped, tag = 'input window, operand 6, single buffered']
    #allocation11 [shape = 'u8[8192]{0}', space=vmem, size = 0x2000, scoped, tag = 'output window, operand 0, single buffered']
    %17 = vsyncpa [#allocation3], 0
    %18 = vsyncpa [#allocation6], 0
    %19 = vsyncpa [#allocation9], 0
    %20 = vsyncpa [#allocation4], 0
    // Predicated region
    $region2: #{tpu_custom_call.1} parent=1 // pred_check
      _
    $region3: #{tpu_custom_call.1} parent=1 // pred_check_branch
      %22 = sbr.rel (0) target = $region5
    $region4: #{tpu_custom_call.1} parent=1 // pred_region
      %s24 = ssub.s32 256, 256
      %25 = vsyncadd [#allocation3], %s24
      %s26 = sshll.u32 [#allocation2], 4
      %s27 = int_to_ptr.vmem [resolvable:$true] %s26
      %32 = dma.hbm_to_vmem [thread:$0]  %s0, 256, %s27, [#allocation3], 128, 128, 8
    $region5: #{tpu_custom_call.1} parent=1 // pred_fallthru
      _
    // Predicated region
    $region6: #{tpu_custom_call.1} parent=1 // pred_check
      _
    $region7: #{tpu_custom_call.1} parent=1 // pred_check_branch
      %34 = sbr.rel (0) target = $region9
    $region8: #{tpu_custom_call.1} parent=1 // pred_region
      %s36 = ssub.s32 256, 256
      %37 = vsyncadd [#allocation6], %s36
      %s38 = sshll.u32 [#allocation5], 4
      %s39 = int_to_ptr.vmem [resolvable:$true] %s38
      %44 = dma.hbm_to_vmem [thread:$0]  %s1, 256, %s39, [#allocation6], 128, 128, 8
    $region9: #{tpu_custom_call.1} parent=1 // pred_fallthru
      _
    // Predicated region
    $region10: #{tpu_custom_call.1} parent=1 // pred_check
      _
    $region11: #{tpu_custom_call.1} parent=1 // pred_check_branch
      %46 = sbr.rel (0) target = $region13
    $region12: #{tpu_custom_call.1} parent=1 // pred_region
      %s48 = ssub.s32 256, 256
      %49 = vsyncadd [#allocation6], %s48
      %s50 = sshll.u32 [#allocation7], 4
      %s51 = int_to_ptr.vmem [resolvable:$true] %s50
      %56 = dma.hbm_to_vmem [thread:$0]  %s2, 256, %s51, [#allocation6], 128, 128, 8
    $region13: #{tpu_custom_call.1} parent=1 // pred_fallthru
      _
    // Predicated region
    $region14: #{tpu_custom_call.1} parent=1 // pred_check
      _
    $region15: #{tpu_custom_call.1} parent=1 // pred_check_branch
      %58 = sbr.rel (0) target = $region17
    $region16: #{tpu_custom_call.1} parent=1 // pred_region
      _
    $region17: #{tpu_custom_call.1} parent=1 // pred_fallthru
      _
    // Predicated region
    $region18: #{tpu_custom_call.1} parent=1 // pred_check
      _
    $region19: #{tpu_custom_call.1} parent=1 // pred_check_branch
      %60 = sbr.rel (0) target = $region21
    $region20: #{tpu_custom_call.1} parent=1 // pred_region
      %s62 = ssub.s32 128, 128
      %63 = vsyncadd [#allocation9], %s62
      %s65 = sshll.u32 [#allocation8], 4
      %s66 = int_to_ptr.vmem [resolvable:$true] %s65
      %68 = dma.hbm_to_vmem [thread:$0]  %s4, 128, %s66, [#allocation9]
    $region21: #{tpu_custom_call.1} parent=1 // pred_fallthru
      _
    // Predicated region
    $region22: #{tpu_custom_call.1} parent=1 // pred_check
      _
    $region23: #{tpu_custom_call.1} parent=1 // pred_check_branch
      %70 = sbr.rel (0) target = $region25
    $region24: #{tpu_custom_call.1} parent=1 // pred_region
      _
    $region25: #{tpu_custom_call.1} parent=1 // pred_fallthru
      _
    // Predicated region
    $region26: #{tpu_custom_call.1} parent=1 // pred_check
      _
    $region27: #{tpu_custom_call.1} parent=1 // pred_check_branch
      %72 = sbr.rel (0) target = $region29
    $region28: #{tpu_custom_call.1} parent=1 // pred_region
      %s74 = ssub.s32 128, 128
      %75 = vsyncadd [#allocation9], %s74
      %s77 = sshll.u32 [#allocation10], 4
      %s78 = int_to_ptr.vmem [resolvable:$true] %s77
      %80 = dma.hbm_to_vmem [thread:$0]  %s6, 128, %s78, [#allocation9]
    $region29: #{tpu_custom_call.1} parent=1 // pred_fallthru
      _
    // Predicated region
    $region30: #{tpu_custom_call.1} parent=1 // pred_check
      _
    $region31: #{tpu_custom_call.1} parent=1 // pred_check_branch
      %82 = sbr.rel (0) target = $region33
    $region32: #{tpu_custom_call.1} parent=1 // pred_region
      _
    $region33: #{tpu_custom_call.1} parent=1 // pred_fallthru
      _
    // Predicated region
    $region34: #{tpu_custom_call.1} parent=1 // pred_check
      _
    $region35: #{tpu_custom_call.1} parent=1 // pred_check_branch
      %84 = sbr.rel (0) target = $region37
    $region36: #{tpu_custom_call.1} parent=1 // pred_region
      _
    $region37: #{tpu_custom_call.1} parent=1 // pred_fallthru
      _
    // Predicated region
    $region38: #{tpu_custom_call.1} parent=1 // pred_check
      _
    $region39: #{tpu_custom_call.1} parent=1 // pred_check_branch
      %86 = sbr.rel (0) target = $region41
    $region40: #{tpu_custom_call.1} parent=1 // pred_region
      _
    $region41: #{tpu_custom_call.1} parent=1 // pred_fallthru
      _
    // Predicated region
    $region42: #{tpu_custom_call.1} parent=1 // pred_check
      _
    $region43: #{tpu_custom_call.1} parent=1 // pred_check_branch
      %88 = sbr.rel (0) target = $region45
    $region44: #{tpu_custom_call.1} parent=1 // pred_region
      _
    $region45: #{tpu_custom_call.1} parent=1 // pred_fallthru
      _
    // Predicated region
    $region46: #{tpu_custom_call.1} parent=1 // pred_check
      _
    $region47: #{tpu_custom_call.1} parent=1 // pred_check_branch
      %90 = sbr.rel (0) target = $region49
    $region48: #{tpu_custom_call.1} parent=1 // pred_region
      _
    $region49: #{tpu_custom_call.1} parent=1 // pred_fallthru
      _
    // Predicated region
    $region50: #{tpu_custom_call.1} parent=1 // pred_check
      _
    $region51: #{tpu_custom_call.1} parent=1 // pred_check_branch
      %92 = sbr.rel (0) target = $region53
    $region52: #{tpu_custom_call.1} parent=1 // pred_region
      %93 = dma.done [#allocation3], 256
    $region53: #{tpu_custom_call.1} parent=1 // pred_fallthru
      _
    // Predicated region
    $region54: #{tpu_custom_call.1} parent=1 // pred_check
      _
    $region55: #{tpu_custom_call.1} parent=1 // pred_check_branch
      %95 = sbr.rel (0) target = $region57
    $region56: #{tpu_custom_call.1} parent=1 // pred_region
      %96 = dma.done [#allocation6], 256
    $region57: #{tpu_custom_call.1} parent=1 // pred_fallthru
      _
    // Predicated region
    $region58: #{tpu_custom_call.1} parent=1 // pred_check
      _
    $region59: #{tpu_custom_call.1} parent=1 // pred_check_branch
      %98 = sbr.rel (0) target = $region61
    $region60: #{tpu_custom_call.1} parent=1 // pred_region
      %99 = dma.done [#allocation6], 256
    $region61: #{tpu_custom_call.1} parent=1 // pred_fallthru
      _
    // Predicated region
    $region62: #{tpu_custom_call.1} parent=1 // pred_check
      _
    $region63: #{tpu_custom_call.1} parent=1 // pred_check_branch
      %101 = sbr.rel (0) target = $region65
    $region64: #{tpu_custom_call.1} parent=1 // pred_region
      %102 = dma.done [#allocation9], 128
    $region65: #{tpu_custom_call.1} parent=1 // pred_fallthru
      _
    // Predicated region
    $region66: #{tpu_custom_call.1} parent=1 // pred_check
      _
    $region67: #{tpu_custom_call.1} parent=1 // pred_check_branch
      %104 = sbr.rel (0) target = $region69
    $region68: #{tpu_custom_call.1} parent=1 // pred_region
      %105 = dma.done [#allocation9], 128
    $region69: #{tpu_custom_call.1} parent=1 // pred_fallthru
      _
    %v106 = vld [vmem:[#allocation2] sm:$0xff]
    %v107 = vld [vmem:[#allocation2 + $0x8] sm:$0xff]
    %v108 = vld [vmem:[%s3] sm:$0xff]
    %v109 = vld [vmem:[%s7] sm:$0x1]
    %v111 = vlaneseq
    %v112 = vshrl.u32 %v111, 7
    %v113 = vsub.s32 0, %v112
    %v114 = vrot.slane %v109, %v113
    %vm116 = vcmask 64512
    %v118 = vsel %vm116, %v106, 0
    %v121 = vsel %vm116, %v107, 0
    %v124 = vsel %vm116, %v108, 0
    %126 = vmatprep.subr.mxu0 0.0
    %127 = vmatpush1.xpose.msra.mxu0 %v124
    %128 = vmatprep.subr.mxu0 0.0
    %129 = vmatpush1.xpose.msra.mxu0 0.0
    %130 = vmatprep.subr.mxu0 0.0
    %131 = vmatpush1.xpose.msra.mxu0 0.0
    %132 = vmatprep.subr.mxu0 0.0
    %133 = vmatpush1.xpose.msra.mxu0 0.0
    %134 = vmatprep.subr.mxu0 0.0
    %135 = vmatpush1.xpose.msra.mxu0 0.0
    %136 = vmatprep.subr.mxu0 0.0
    %137 = vmatpush1.xpose.msra.mxu0 0.0
    %138 = vmatprep.subr.mxu0 0.0
    %139 = vmatpush1.xpose.msra.mxu0 0.0
    %140 = vmatprep.subr.mxu0 0.0
    %141 = vmatpush1.xpose.msra.mxu0 0.0
    %142 = vmatprep.subr.mxu0 0.0
    %143 = vmatpush1.xpose.msra.mxu0 0.0
    %144 = vmatprep.subr.mxu0 0.0
    %145 = vmatpush1.xpose.msra.mxu0 0.0
    %146 = vmatprep.subr.mxu0 0.0
    %147 = vmatpush1.xpose.msra.mxu0 0.0
    %148 = vmatprep.subr.mxu0 0.0
    %149 = vmatpush1.xpose.msra.mxu0 0.0
    %150 = vmatprep.subr.mxu0 0.0
    %151 = vmatpush1.xpose.msra.mxu0 0.0
    %152 = vmatprep.subr.mxu0 0.0
    %153 = vmatpush1.xpose.msra.mxu0 0.0
    %154 = vmatprep.subr.mxu0 0.0
    %155 = vmatpush1.xpose.msra.mxu0 0.0
    %156 = vmatprep.subr.mxu0 0.0
    %157 = vmatpush1.xpose.msra.mxu0 0.0
    %158 = vmatprep.subr.mxu0 0.0
    %159 = vmatpush1.xpose.msra.mxu0 0.0
    %160 = vmatprep.subr.mxu0 0.0
    %161 = vmatpush1.xpose.msra.mxu0 0.0
    %162 = vmatprep.subr.mxu0 0.0
    %163 = vmatpush1.xpose.msra.mxu0 0.0
    %164 = vmatprep.subr.mxu0 0.0
    %165 = vmatpush1.xpose.msra.mxu0 0.0
    %166 = vmatprep.subr.mxu0 0.0
    %167 = vmatpush1.xpose.msra.mxu0 0.0
    %168 = vmatprep.subr.mxu0 0.0
    %169 = vmatpush1.xpose.msra.mxu0 0.0
    %170 = vmatprep.subr.mxu0 0.0
    %171 = vmatpush1.xpose.msra.mxu0 0.0
    %172 = vmatprep.subr.mxu0 0.0
    %173 = vmatpush1.xpose.msra.mxu0 0.0
    %174 = vmatprep.subr.mxu0 0.0
    %175 = vmatpush1.xpose.msra.mxu0 0.0
    %176 = vmatprep.subr.mxu0 0.0
    %177 = vmatpush1.xpose.msra.mxu0 0.0
    %178 = vmatprep.subr.mxu0 0.0
    %179 = vmatpush1.xpose.msra.mxu0 0.0
    %180 = vmatprep.subr.mxu0 0.0
    %181 = vmatpush1.xpose.msra.mxu0 0.0
    %182 = vmatprep.subr.mxu0 0.0
    %183 = vmatpush1.xpose.msra.mxu0 0.0
    %184 = vmatprep.subr.mxu0 0.0
    %185 = vmatpush1.xpose.msra.mxu0 0.0
    %186 = vmatprep.subr.mxu0 0.0
    %187 = vmatpush1.xpose.msra.mxu0 0.0
    %188 = vmatprep.subr.mxu0 0.0
    %189 = vmatpush1.xpose.msra.mxu0 0.0
    %190 = vmatprep.mubr.f32.mxu0 0.0
    %191 = vmatmul.mubr.f32.gmra.mrb[0].mxu0 %v118
    %v192 = vpop.f32.mrb[0].mxu0
    %v193 = vadd.f32 %v114, %v192
    %v194 = vpop.f32.mrb[0].mxu0
    %195 = vmatprep.mubr.f32.mxu0 0.0
    %196 = vmatmul.mubr.f32.gmra.mrb[0].mxu0 %v121
    %v197 = vpop.f32.mrb[0].mxu0
    %v198 = vadd.f32 %v114, %v197
    %v199 = vpop.f32.mrb[0].mxu0
    %200 = vdwg.mxu0
    %v201 = vld [vmem:[#allocation5] sm:$0xff]
    %v202 = vld [vmem:[#allocation5 + $0x8] sm:$0xff]
    %v203 = vld [vmem:[#allocation8] sm:$0xff]
    %v204 = vld [vmem:[%s8] sm:$0x1]
    %v206 = vlaneseq
    %v207 = vshrl.u32 %v206, 7
    %v208 = vsub.s32 0, %v207
    %v209 = vrot.slane %v204, %v208
    %v212 = vsel %vm116, %v201, 0
    %v215 = vsel %vm116, %v202, 0
    %v218 = vsel %vm116, %v203, 0
    %220 = vmatprep.subr.mxu0 0.0
    %221 = vmatpush1.xpose.msra.mxu0 %v218
    %222 = vmatprep.subr.mxu0 0.0
    %223 = vmatpush1.xpose.msra.mxu0 0.0
    %224 = vmatprep.subr.mxu0 0.0
    %225 = vmatpush1.xpose.msra.mxu0 0.0
    %226 = vmatprep.subr.mxu0 0.0
    %227 = vmatpush1.xpose.msra.mxu0 0.0
    %228 = vmatprep.subr.mxu0 0.0
    %229 = vmatpush1.xpose.msra.mxu0 0.0
    %230 = vmatprep.subr.mxu0 0.0
    %231 = vmatpush1.xpose.msra.mxu0 0.0
    %232 = vmatprep.subr.mxu0 0.0
    %233 = vmatpush1.xpose.msra.mxu0 0.0
    %234 = vmatprep.subr.mxu0 0.0
    %235 = vmatpush1.xpose.msra.mxu0 0.0
    %236 = vmatprep.subr.mxu0 0.0
    %237 = vmatpush1.xpose.msra.mxu0 0.0
    %238 = vmatprep.subr.mxu0 0.0
    %239 = vmatpush1.xpose.msra.mxu0 0.0
    %240 = vmatprep.subr.mxu0 0.0
    %241 = vmatpush1.xpose.msra.mxu0 0.0
    %242 = vmatprep.subr.mxu0 0.0
    %243 = vmatpush1.xpose.msra.mxu0 0.0
    %244 = vmatprep.subr.mxu0 0.0
    %245 = vmatpush1.xpose.msra.mxu0 0.0
    %246 = vmatprep.subr.mxu0 0.0
    %247 = vmatpush1.xpose.msra.mxu0 0.0
    %248 = vmatprep.subr.mxu0 0.0
    %249 = vmatpush1.xpose.msra.mxu0 0.0
    %250 = vmatprep.subr.mxu0 0.0
    %251 = vmatpush1.xpose.msra.mxu0 0.0
    %252 = vmatprep.subr.mxu0 0.0
    %253 = vmatpush1.xpose.msra.mxu0 0.0
    %254 = vmatprep.subr.mxu0 0.0
    %255 = vmatpush1.xpose.msra.mxu0 0.0
    %256 = vmatprep.subr.mxu0 0.0
    %257 = vmatpush1.xpose.msra.mxu0 0.0
    %258 = vmatprep.subr.mxu0 0.0
    %259 = vmatpush1.xpose.msra.mxu0 0.0
    %260 = vmatprep.subr.mxu0 0.0
    %261 = vmatpush1.xpose.msra.mxu0 0.0
    %262 = vmatprep.subr.mxu0 0.0
    %263 = vmatpush1.xpose.msra.mxu0 0.0
    %264 = vmatprep.subr.mxu0 0.0
    %265 = vmatpush1.xpose.msra.mxu0 0.0
    %266 = vmatprep.subr.mxu0 0.0
    %267 = vmatpush1.xpose.msra.mxu0 0.0
    %268 = vmatprep.subr.mxu0 0.0
    %269 = vmatpush1.xpose.msra.mxu0 0.0
    %270 = vmatprep.subr.mxu0 0.0
    %271 = vmatpush1.xpose.msra.mxu0 0.0
    %272 = vmatprep.subr.mxu0 0.0
    %273 = vmatpush1.xpose.msra.mxu0 0.0
    %274 = vmatprep.subr.mxu0 0.0
    %275 = vmatpush1.xpose.msra.mxu0 0.0
    %276 = vmatprep.subr.mxu0 0.0
    %277 = vmatpush1.xpose.msra.mxu0 0.0
    %278 = vmatprep.subr.mxu0 0.0
    %279 = vmatpush1.xpose.msra.mxu0 0.0
    %280 = vmatprep.subr.mxu0 0.0
    %281 = vmatpush1.xpose.msra.mxu0 0.0
    %282 = vmatprep.subr.mxu0 0.0
    %283 = vmatpush1.xpose.msra.mxu0 0.0
    %284 = vmatprep.mubr.f32.mxu0 0.0
    %285 = vmatmul.mubr.f32.gmra.mrb[0].mxu0 %v212
    %v286 = vpop.f32.mrb[0].mxu0
    %v287 = vadd.f32 %v209, %v286
    %v288 = vpop.f32.mrb[0].mxu0
    %289 = vmatprep.mubr.f32.mxu0 0.0
    %290 = vmatmul.mubr.f32.gmra.mrb[0].mxu0 %v215
    %v291 = vpop.f32.mrb[0].mxu0
    %v292 = vadd.f32 %v209, %v291
    %v293 = vpop.f32.mrb[0].mxu0
    %294 = vdwg.mxu0
    %v295 = vld [vmem:[#allocation7] sm:$0xff]
    %v296 = vld [vmem:[#allocation7 + $0x8] sm:$0xff]
    %v297 = vld [vmem:[%s5] sm:$0xff]
    %v298 = vld [vmem:[%s9] sm:$0x1]
    %v300 = vlaneseq
    %v301 = vshrl.u32 %v300, 7
    %v302 = vsub.s32 0, %v301
    %v303 = vrot.slane %v298, %v302
    %v306 = vsel %vm116, %v295, 0
    %v309 = vsel %vm116, %v296, 0
    %v312 = vsel %vm116, %v297, 0
    %314 = vmatprep.subr.mxu0 0.0
    %315 = vmatpush1.xpose.msra.mxu0 %v312
    %316 = vmatprep.subr.mxu0 0.0
    %317 = vmatpush1.xpose.msra.mxu0 0.0
    %318 = vmatprep.subr.mxu0 0.0
    %319 = vmatpush1.xpose.msra.mxu0 0.0
    %320 = vmatprep.subr.mxu0 0.0
    %321 = vmatpush1.xpose.msra.mxu0 0.0
    %322 = vmatprep.subr.mxu0 0.0
    %323 = vmatpush1.xpose.msra.mxu0 0.0
    %324 = vmatprep.subr.mxu0 0.0
    %325 = vmatpush1.xpose.msra.mxu0 0.0
    %326 = vmatprep.subr.mxu0 0.0
    %327 = vmatpush1.xpose.msra.mxu0 0.0
    %328 = vmatprep.subr.mxu0 0.0
    %329 = vmatpush1.xpose.msra.mxu0 0.0
    %330 = vmatprep.subr.mxu0 0.0
    %331 = vmatpush1.xpose.msra.mxu0 0.0
    %332 = vmatprep.subr.mxu0 0.0
    %333 = vmatpush1.xpose.msra.mxu0 0.0
    %334 = vmatprep.subr.mxu0 0.0
    %335 = vmatpush1.xpose.msra.mxu0 0.0
    %336 = vmatprep.subr.mxu0 0.0
    %337 = vmatpush1.xpose.msra.mxu0 0.0
    %338 = vmatprep.subr.mxu0 0.0
    %339 = vmatpush1.xpose.msra.mxu0 0.0
    %340 = vmatprep.subr.mxu0 0.0
    %341 = vmatpush1.xpose.msra.mxu0 0.0
    %342 = vmatprep.subr.mxu0 0.0
    %343 = vmatpush1.xpose.msra.mxu0 0.0
    %344 = vmatprep.subr.mxu0 0.0
    %345 = vmatpush1.xpose.msra.mxu0 0.0
    %346 = vmatprep.subr.mxu0 0.0
    %347 = vmatpush1.xpose.msra.mxu0 0.0
    %348 = vmatprep.subr.mxu0 0.0
    %349 = vmatpush1.xpose.msra.mxu0 0.0
    %350 = vmatprep.subr.mxu0 0.0
    %351 = vmatpush1.xpose.msra.mxu0 0.0
    %352 = vmatprep.subr.mxu0 0.0
    %353 = vmatpush1.xpose.msra.mxu0 0.0
    %354 = vmatprep.subr.mxu0 0.0
    %355 = vmatpush1.xpose.msra.mxu0 0.0
    %356 = vmatprep.subr.mxu0 0.0
    %357 = vmatpush1.xpose.msra.mxu0 0.0
    %358 = vmatprep.subr.mxu0 0.0
    %359 = vmatpush1.xpose.msra.mxu0 0.0
    %360 = vmatprep.subr.mxu0 0.0
    %361 = vmatpush1.xpose.msra.mxu0 0.0
    %362 = vmatprep.subr.mxu0 0.0
    %363 = vmatpush1.xpose.msra.mxu0 0.0
    %364 = vmatprep.subr.mxu0 0.0
    %365 = vmatpush1.xpose.msra.mxu0 0.0
    %366 = vmatprep.subr.mxu0 0.0
    %367 = vmatpush1.xpose.msra.mxu0 0.0
    %368 = vmatprep.subr.mxu0 0.0
    %369 = vmatpush1.xpose.msra.mxu0 0.0
    %370 = vmatprep.subr.mxu0 0.0
    %371 = vmatpush1.xpose.msra.mxu0 0.0
    %372 = vmatprep.subr.mxu0 0.0
    %373 = vmatpush1.xpose.msra.mxu0 0.0
    %374 = vmatprep.subr.mxu0 0.0
    %375 = vmatpush1.xpose.msra.mxu0 0.0
    %376 = vmatprep.subr.mxu0 0.0
    %377 = vmatpush1.xpose.msra.mxu0 0.0
    %378 = vmatprep.mubr.f32.mxu0 0.0
    %379 = vmatmul.mubr.f32.gmra.mrb[0].mxu0 %v306
    %v380 = vpop.f32.mrb[0].mxu0
    %v381 = vadd.f32 %v303, %v380
    %v382 = vpop.f32.mrb[0].mxu0
    %383 = vmatprep.mubr.f32.mxu0 0.0
    %384 = vmatmul.mubr.f32.gmra.mrb[0].mxu0 %v309
    %v385 = vpop.f32.mrb[0].mxu0
    %v386 = vadd.f32 %v303, %v385
    %v387 = vpop.f32.mrb[0].mxu0
    %388 = vdwg.mxu0
    %v391 = vcombine.high %v193, %v193
    %v393 = vunpack.c.l.s4 1966171168
    %v394 = vunpack.c.0.s8 %v393
    %v395 = vlaneseq
    %v396 = vshrl.u32 %v395, 7
    %v397 = vsub.s32 %v394, %v396
    %v398 = vrot.slane %v193, %v397
    %v400 = vunpack.c.l.s4 1966171168
    %v401 = vunpack.c.0.s8 %v400
    %v402 = vlaneseq
    %v403 = vshrl.u32 %v402, 7
    %v404 = vsub.s32 %v401, %v403
    %v405 = vrot.slane %v391, %v404
    %v406 = vcombine.high %v398, %v398
    %v407 = vcombine.high %v405, %v405
    %v409 = vunpack.c.l.s4 1966171168
    %v410 = vunpack.c.0.s8 %v409
    %v411 = vlaneseq
    %v412 = vshrl.u32 %v411, 7
    %v413 = vsub.s32 %v410, %v412
    %v414 = vrot.slane %v398, %v413
    %v416 = vunpack.c.l.s4 1966171168
    %v417 = vunpack.c.0.s8 %v416
    %v418 = vlaneseq
    %v419 = vshrl.u32 %v418, 7
    %v420 = vsub.s32 %v417, %v419
    %v421 = vrot.slane %v405, %v420
    %v423 = vunpack.c.l.s4 1966171168
    %v424 = vunpack.c.0.s8 %v423
    %v425 = vlaneseq
    %v426 = vshrl.u32 %v425, 7
    %v427 = vsub.s32 %v424, %v426
    %v428 = vrot.slane %v406, %v427
    %v430 = vunpack.c.l.s4 1966171168
    %v431 = vunpack.c.0.s8 %v430
    %v432 = vlaneseq
    %v433 = vshrl.u32 %v432, 7
    %v434 = vsub.s32 %v431, %v433
    %v435 = vrot.slane %v407, %v434
    %v436 = vcombine.high %v414, %v414
    %v437 = vcombine.high %v421, %v421
    %v438 = vcombine.high %v428, %v428
    %v439 = vcombine.high %v435, %v435
    %v440 = vcombine.high %v198, %v198
    %v442 = vunpack.c.l.s4 1966171168
    %v443 = vunpack.c.0.s8 %v442
    %v444 = vlaneseq
    %v445 = vshrl.u32 %v444, 7
    %v446 = vsub.s32 %v443, %v445
    %v447 = vrot.slane %v198, %v446
    %v449 = vunpack.c.l.s4 1966171168
    %v450 = vunpack.c.0.s8 %v449
    %v451 = vlaneseq
    %v452 = vshrl.u32 %v451, 7
    %v453 = vsub.s32 %v450, %v452
    %v454 = vrot.slane %v440, %v453
    %v455 = vcombine.high %v447, %v447
    %v456 = vcombine.high %v454, %v454
    %v458 = vunpack.c.l.s4 1966171168
    %v459 = vunpack.c.0.s8 %v458
    %v460 = vlaneseq
    %v461 = vshrl.u32 %v460, 7
    %v462 = vsub.s32 %v459, %v461
    %v463 = vrot.slane %v447, %v462
    %v465 = vunpack.c.l.s4 1966171168
    %v466 = vunpack.c.0.s8 %v465
    %v467 = vlaneseq
    %v468 = vshrl.u32 %v467, 7
    %v469 = vsub.s32 %v466, %v468
    %v470 = vrot.slane %v454, %v469
    %v472 = vunpack.c.l.s4 1966171168
    %v473 = vunpack.c.0.s8 %v472
    %v474 = vlaneseq
    %v475 = vshrl.u32 %v474, 7
    %v476 = vsub.s32 %v473, %v475
    %v477 = vrot.slane %v455, %v476
    %v479 = vunpack.c.l.s4 1966171168
    %v480 = vunpack.c.0.s8 %v479
    %v481 = vlaneseq
    %v482 = vshrl.u32 %v481, 7
    %v483 = vsub.s32 %v480, %v482
    %v484 = vrot.slane %v456, %v483
    %v485 = vcombine.high %v463, %v463
    %v486 = vcombine.high %v470, %v470
    %v487 = vcombine.high %v477, %v477
    %v488 = vcombine.high %v484, %v484
    %v489 = vlaneseq
    %v490 = vshrl.u32 %v489, 7
    %v491 = vsub.s32 0, %v490
    %v492 = vrot.slane %v414, %v491
    %v493 = vlaneseq
    %v494 = vshrl.u32 %v493, 7
    %v495 = vsub.s32 0, %v494
    %v496 = vrot.slane %v428, %v495
    %v497 = vlaneseq
    %v498 = vshrl.u32 %v497, 7
    %v499 = vsub.s32 0, %v498
    %v500 = vrot.slane %v436, %v499
    %v501 = vlaneseq
    %v502 = vshrl.u32 %v501, 7
    %v503 = vsub.s32 0, %v502
    %v504 = vrot.slane %v438, %v503
    %v505 = vlaneseq
    %v506 = vshrl.u32 %v505, 7
    %v507 = vsub.s32 0, %v506
    %v508 = vrot.slane %v421, %v507
    %v509 = vlaneseq
    %v510 = vshrl.u32 %v509, 7
    %v511 = vsub.s32 0, %v510
    %v512 = vrot.slane %v435, %v511
    %v513 = vlaneseq
    %v514 = vshrl.u32 %v513, 7
    %v515 = vsub.s32 0, %v514
    %v516 = vrot.slane %v437, %v515
    %v517 = vlaneseq
    %v518 = vshrl.u32 %v517, 7
    %v519 = vsub.s32 0, %v518
    %v520 = vrot.slane %v439, %v519
    %v521 = vlaneseq
    %v522 = vshrl.u32 %v521, 7
    %v523 = vsub.s32 0, %v522
    %v524 = vrot.slane %v463, %v523
    %v525 = vlaneseq
    %v526 = vshrl.u32 %v525, 7
    %v527 = vsub.s32 0, %v526
    %v528 = vrot.slane %v477, %v527
    %v529 = vlaneseq
    %v530 = vshrl.u32 %v529, 7
    %v531 = vsub.s32 0, %v530
    %v532 = vrot.slane %v485, %v531
    %v533 = vlaneseq
    %v534 = vshrl.u32 %v533, 7
    %v535 = vsub.s32 0, %v534
    %v536 = vrot.slane %v487, %v535
    %v537 = vlaneseq
    %v538 = vshrl.u32 %v537, 7
    %v539 = vsub.s32 0, %v538
    %v540 = vrot.slane %v470, %v539
    %v541 = vlaneseq
    %v542 = vshrl.u32 %v541, 7
    %v543 = vsub.s32 0, %v542
    %v544 = vrot.slane %v484, %v543
    %v545 = vlaneseq
    %v546 = vshrl.u32 %v545, 7
    %v547 = vsub.s32 0, %v546
    %v548 = vrot.slane %v486, %v547
    %v549 = vlaneseq
    %v550 = vshrl.u32 %v549, 7
    %v551 = vsub.s32 0, %v550
    %v552 = vrot.slane %v488, %v551
    %v569 = vmul.f32 %v492, %v287
    %v570 = vmul.f32 %v496, %v287
    %v571 = vmul.f32 %v500, %v287
    %v572 = vmul.f32 %v504, %v287
    %v573 = vmul.f32 %v508, %v287
    %v574 = vmul.f32 %v512, %v287
    %v575 = vmul.f32 %v516, %v287
    %v576 = vmul.f32 %v520, %v287
    %v577 = vmul.f32 %v524, %v292
    %v578 = vmul.f32 %v528, %v292
    %v579 = vmul.f32 %v532, %v292
    %v580 = vmul.f32 %v536, %v292
    %v581 = vmul.f32 %v540, %v292
    %v582 = vmul.f32 %v544, %v292
    %v583 = vmul.f32 %v548, %v292
    %v584 = vmul.f32 %v552, %v292
    %v585 = vsel %vm116, %v569, -inf
    %v586 = vrot.slane %v585, 4
    %v587 = vmax.f32 %v585, %v586
    %v588 = vrot.slane %v587, 2
    %v589 = vmax.f32 %v587, %v588
    %v590 = vrot.slane %v589, 1
    %v591 = vmax.f32 %v589, %v590
    %v592 = vsel %vm116, %v570, -inf
    %v593 = vrot.slane %v592, 4
    %v594 = vmax.f32 %v592, %v593
    %v595 = vrot.slane %v594, 2
    %v596 = vmax.f32 %v594, %v595
    %v597 = vrot.slane %v596, 1
    %v598 = vmax.f32 %v596, %v597
    %v599 = vsel %vm116, %v571, -inf
    %v600 = vrot.slane %v599, 4
    %v601 = vmax.f32 %v599, %v600
    %v602 = vrot.slane %v601, 2
    %v603 = vmax.f32 %v601, %v602
    %v604 = vrot.slane %v603, 1
    %v605 = vmax.f32 %v603, %v604
    %v606 = vsel %vm116, %v572, -inf
    %v607 = vrot.slane %v606, 4
    %v608 = vmax.f32 %v606, %v607
    %v609 = vrot.slane %v608, 2
    %v610 = vmax.f32 %v608, %v609
    %v611 = vrot.slane %v610, 1
    %v612 = vmax.f32 %v610, %v611
    %v613 = vsel %vm116, %v573, -inf
    %v614 = vrot.slane %v613, 4
    %v615 = vmax.f32 %v613, %v614
    %v616 = vrot.slane %v615, 2
    %v617 = vmax.f32 %v615, %v616
    %v618 = vrot.slane %v617, 1
    %v619 = vmax.f32 %v617, %v618
    %v620 = vsel %vm116, %v574, -inf
    %v621 = vrot.slane %v620, 4
    %v622 = vmax.f32 %v620, %v621
    %v623 = vrot.slane %v622, 2
    %v624 = vmax.f32 %v622, %v623
    %v625 = vrot.slane %v624, 1
    %v626 = vmax.f32 %v624, %v625
    %v627 = vsel %vm116, %v575, -inf
    %v628 = vrot.slane %v627, 4
    %v629 = vmax.f32 %v627, %v628
    %v630 = vrot.slane %v629, 2
    %v631 = vmax.f32 %v629, %v630
    %v632 = vrot.slane %v631, 1
    %v633 = vmax.f32 %v631, %v632
    %v634 = vsel %vm116, %v576, -inf
    %v635 = vrot.slane %v634, 4
    %v636 = vmax.f32 %v634, %v635
    %v637 = vrot.slane %v636, 2
    %v638 = vmax.f32 %v636, %v637
    %v639 = vrot.slane %v638, 1
    %v640 = vmax.f32 %v638, %v639
    %v641 = vsel %vm116, %v577, -inf
    %v642 = vrot.slane %v641, 4
    %v643 = vmax.f32 %v641, %v642
    %v644 = vrot.slane %v643, 2
    %v645 = vmax.f32 %v643, %v644
    %v646 = vrot.slane %v645, 1
    %v647 = vmax.f32 %v645, %v646
    %v648 = vsel %vm116, %v578, -inf
    %v649 = vrot.slane %v648, 4
    %v650 = vmax.f32 %v648, %v649
    %v651 = vrot.slane %v650, 2
    %v652 = vmax.f32 %v650, %v651
    %v653 = vrot.slane %v652, 1
    %v654 = vmax.f32 %v652, %v653
    %v655 = vsel %vm116, %v579, -inf
    %v656 = vrot.slane %v655, 4
    %v657 = vmax.f32 %v655, %v656
    %v658 = vrot.slane %v657, 2
    %v659 = vmax.f32 %v657, %v658
    %v660 = vrot.slane %v659, 1
    %v661 = vmax.f32 %v659, %v660
    %v662 = vsel %vm116, %v580, -inf
    %v663 = vrot.slane %v662, 4
    %v664 = vmax.f32 %v662, %v663
    %v665 = vrot.slane %v664, 2
    %v666 = vmax.f32 %v664, %v665
    %v667 = vrot.slane %v666, 1
    %v668 = vmax.f32 %v666, %v667
    %v669 = vsel %vm116, %v581, -inf
    %v670 = vrot.slane %v669, 4
    %v671 = vmax.f32 %v669, %v670
    %v672 = vrot.slane %v671, 2
    %v673 = vmax.f32 %v671, %v672
    %v674 = vrot.slane %v673, 1
    %v675 = vmax.f32 %v673, %v674
    %v676 = vsel %vm116, %v582, -inf
    %v677 = vrot.slane %v676, 4
    %v678 = vmax.f32 %v676, %v677
    %v679 = vrot.slane %v678, 2
    %v680 = vmax.f32 %v678, %v679
    %v681 = vrot.slane %v680, 1
    %v682 = vmax.f32 %v680, %v681
    %v683 = vsel %vm116, %v583, -inf
    %v684 = vrot.slane %v683, 4
    %v685 = vmax.f32 %v683, %v684
    %v686 = vrot.slane %v685, 2
    %v687 = vmax.f32 %v685, %v686
    %v688 = vrot.slane %v687, 1
    %v689 = vmax.f32 %v687, %v688
    %v690 = vsel %vm116, %v584, -inf
    %v691 = vrot.slane %v690, 4
    %v692 = vmax.f32 %v690, %v691
    %v693 = vrot.slane %v692, 2
    %v694 = vmax.f32 %v692, %v693
    %v695 = vrot.slane %v694, 1
    %v696 = vmax.f32 %v694, %v695
    %v697 = vsub.f32 %v569, %v591
    %v698 = vsub.f32 %v570, %v598
    %v699 = vsub.f32 %v571, %v605
    %v700 = vsub.f32 %v572, %v612
    %v701 = vsub.f32 %v573, %v619
    %v702 = vsub.f32 %v574, %v626
    %v703 = vsub.f32 %v575, %v633
    %v704 = vsub.f32 %v576, %v640
    %v705 = vsub.f32 %v577, %v647
    %v706 = vsub.f32 %v578, %v654
    %v707 = vsub.f32 %v579, %v661
    %v708 = vsub.f32 %v580, %v668
    %v709 = vsub.f32 %v581, %v675
    %v710 = vsub.f32 %v582, %v682
    %v711 = vsub.f32 %v583, %v689
    %v712 = vsub.f32 %v584, %v696
    %v713 = vmul.f32 %v697, 1.442695
    %v714 = vpow.pop %v713
    %v715 = vmul.f32 %v698, 1.442695
    %v716 = vpow.pop %v715
    %v717 = vmul.f32 %v699, 1.442695
    %v718 = vpow.pop %v717
    %v719 = vmul.f32 %v700, 1.442695
    %v720 = vpow.pop %v719
    %v721 = vmul.f32 %v701, 1.442695
    %v722 = vpow.pop %v721
    %v723 = vmul.f32 %v702, 1.442695
    %v724 = vpow.pop %v723
    %v725 = vmul.f32 %v703, 1.442695
    %v726 = vpow.pop %v725
    %v727 = vmul.f32 %v704, 1.442695
    %v728 = vpow.pop %v727
    %v729 = vmul.f32 %v705, 1.442695
    %v730 = vpow.pop %v729
    %v731 = vmul.f32 %v706, 1.442695
    %v732 = vpow.pop %v731
    %v733 = vmul.f32 %v707, 1.442695
    %v734 = vpow.pop %v733
    %v735 = vmul.f32 %v708, 1.442695
    %v736 = vpow.pop %v735
    %v737 = vmul.f32 %v709, 1.442695
    %v738 = vpow.pop %v737
    %v739 = vmul.f32 %v710, 1.442695
    %v740 = vpow.pop %v739
    %v741 = vmul.f32 %v711, 1.442695
    %v742 = vpow.pop %v741
    %v743 = vmul.f32 %v712, 1.442695
    %v744 = vpow.pop %v743
    %v745 = vsel %vm116, %v714, 0.0
    %v746 = vrot.slane %v745, 4
    %v747 = vadd.f32 %v745, %v746
    %v748 = vrot.slane %v747, 2
    %v749 = vadd.f32 %v747, %v748
    %v750 = vrot.slane %v749, 1
    %v751 = vadd.f32 %v749, %v750
    %v752 = vsel %vm116, %v716, 0.0
    %v753 = vrot.slane %v752, 4
    %v754 = vadd.f32 %v752, %v753
    %v755 = vrot.slane %v754, 2
    %v756 = vadd.f32 %v754, %v755
    %v757 = vrot.slane %v756, 1
    %v758 = vadd.f32 %v756, %v757
    %v759 = vsel %vm116, %v718, 0.0
    %v760 = vrot.slane %v759, 4
    %v761 = vadd.f32 %v759, %v760
    %v762 = vrot.slane %v761, 2
    %v763 = vadd.f32 %v761, %v762
    %v764 = vrot.slane %v763, 1
    %v765 = vadd.f32 %v763, %v764
    %v766 = vsel %vm116, %v720, 0.0
    %v767 = vrot.slane %v766, 4
    %v768 = vadd.f32 %v766, %v767
    %v769 = vrot.slane %v768, 2
    %v770 = vadd.f32 %v768, %v769
    %v771 = vrot.slane %v770, 1
    %v772 = vadd.f32 %v770, %v771
    %v773 = vsel %vm116, %v722, 0.0
    %v774 = vrot.slane %v773, 4
    %v775 = vadd.f32 %v773, %v774
    %v776 = vrot.slane %v775, 2
    %v777 = vadd.f32 %v775, %v776
    %v778 = vrot.slane %v777, 1
    %v779 = vadd.f32 %v777, %v778
    %v780 = vsel %vm116, %v724, 0.0
    %v781 = vrot.slane %v780, 4
    %v782 = vadd.f32 %v780, %v781
    %v783 = vrot.slane %v782, 2
    %v784 = vadd.f32 %v782, %v783
    %v785 = vrot.slane %v784, 1
    %v786 = vadd.f32 %v784, %v785
    %v787 = vsel %vm116, %v726, 0.0
    %v788 = vrot.slane %v787, 4
    %v789 = vadd.f32 %v787, %v788
    %v790 = vrot.slane %v789, 2
    %v791 = vadd.f32 %v789, %v790
    %v792 = vrot.slane %v791, 1
    %v793 = vadd.f32 %v791, %v792
    %v794 = vsel %vm116, %v728, 0.0
    %v795 = vrot.slane %v794, 4
    %v796 = vadd.f32 %v794, %v795
    %v797 = vrot.slane %v796, 2
    %v798 = vadd.f32 %v796, %v797
    %v799 = vrot.slane %v798, 1
    %v800 = vadd.f32 %v798, %v799
    %v801 = vsel %vm116, %v730, 0.0
    %v802 = vrot.slane %v801, 4
    %v803 = vadd.f32 %v801, %v802
    %v804 = vrot.slane %v803, 2
    %v805 = vadd.f32 %v803, %v804
    %v806 = vrot.slane %v805, 1
    %v807 = vadd.f32 %v805, %v806
    %v808 = vsel %vm116, %v732, 0.0
    %v809 = vrot.slane %v808, 4
    %v810 = vadd.f32 %v808, %v809
    %v811 = vrot.slane %v810, 2
    %v812 = vadd.f32 %v810, %v811
    %v813 = vrot.slane %v812, 1
    %v814 = vadd.f32 %v812, %v813
    %v815 = vsel %vm116, %v734, 0.0
    %v816 = vrot.slane %v815, 4
    %v817 = vadd.f32 %v815, %v816
    %v818 = vrot.slane %v817, 2
    %v819 = vadd.f32 %v817, %v818
    %v820 = vrot.slane %v819, 1
    %v821 = vadd.f32 %v819, %v820
    %v822 = vsel %vm116, %v736, 0.0
    %v823 = vrot.slane %v822, 4
    %v824 = vadd.f32 %v822, %v823
    %v825 = vrot.slane %v824, 2
    %v826 = vadd.f32 %v824, %v825
    %v827 = vrot.slane %v826, 1
    %v828 = vadd.f32 %v826, %v827
    %v829 = vsel %vm116, %v738, 0.0
    %v830 = vrot.slane %v829, 4
    %v831 = vadd.f32 %v829, %v830
    %v832 = vrot.slane %v831, 2
    %v833 = vadd.f32 %v831, %v832
    %v834 = vrot.slane %v833, 1
    %v835 = vadd.f32 %v833, %v834
    %v836 = vsel %vm116, %v740, 0.0
    %v837 = vrot.slane %v836, 4
    %v838 = vadd.f32 %v836, %v837
    %v839 = vrot.slane %v838, 2
    %v840 = vadd.f32 %v838, %v839
    %v841 = vrot.slane %v840, 1
    %v842 = vadd.f32 %v840, %v841
    %v843 = vsel %vm116, %v742, 0.0
    %v844 = vrot.slane %v843, 4
    %v845 = vadd.f32 %v843, %v844
    %v846 = vrot.slane %v845, 2
    %v847 = vadd.f32 %v845, %v846
    %v848 = vrot.slane %v847, 1
    %v849 = vadd.f32 %v847, %v848
    %v850 = vsel %vm116, %v744, 0.0
    %v851 = vrot.slane %v850, 4
    %v852 = vadd.f32 %v850, %v851
    %v853 = vrot.slane %v852, 2
    %v854 = vadd.f32 %v852, %v853
    %v855 = vrot.slane %v854, 1
    %v856 = vadd.f32 %v854, %v855
    %v857 = vrcp.pop %v751
    %v858 = vrcp.pop %v758
    %v859 = vrcp.pop %v765
    %v860 = vrcp.pop %v772
    %v861 = vrcp.pop %v779
    %v862 = vrcp.pop %v786
    %v863 = vrcp.pop %v793
    %v864 = vrcp.pop %v800
    %v865 = vrcp.pop %v807
    %v866 = vrcp.pop %v814
    %v867 = vrcp.pop %v821
    %v868 = vrcp.pop %v828
    %v869 = vrcp.pop %v835
    %v870 = vrcp.pop %v842
    %v871 = vrcp.pop %v849
    %v872 = vrcp.pop %v856
    %v873 = vmul.f32 %v714, %v857
    %v874 = vmul.f32 %v716, %v858
    %v875 = vmul.f32 %v718, %v859
    %v876 = vmul.f32 %v720, %v860
    %v877 = vmul.f32 %v722, %v861
    %v878 = vmul.f32 %v724, %v862
    %v879 = vmul.f32 %v726, %v863
    %v880 = vmul.f32 %v728, %v864
    %v881 = vmul.f32 %v730, %v865
    %v882 = vmul.f32 %v732, %v866
    %v883 = vmul.f32 %v734, %v867
    %v884 = vmul.f32 %v736, %v868
    %v885 = vmul.f32 %v738, %v869
    %v886 = vmul.f32 %v740, %v870
    %v887 = vmul.f32 %v742, %v871
    %v888 = vmul.f32 %v744, %v872
    %v889 = vmul.f32 %v873, %v381
    %v890 = vmul.f32 %v874, %v381
    %v891 = vmul.f32 %v875, %v381
    %v892 = vmul.f32 %v876, %v381
    %v893 = vmul.f32 %v877, %v381
    %v894 = vmul.f32 %v878, %v381
    %v895 = vmul.f32 %v879, %v381
    %v896 = vmul.f32 %v880, %v381
    %v897 = vmul.f32 %v881, %v386
    %v898 = vmul.f32 %v882, %v386
    %v899 = vmul.f32 %v883, %v386
    %v900 = vmul.f32 %v884, %v386
    %v901 = vmul.f32 %v885, %v386
    %v902 = vmul.f32 %v886, %v386
    %v903 = vmul.f32 %v887, %v386
    %v904 = vmul.f32 %v888, %v386
    %v905 = vsel %vm116, %v889, 0.0
    %v906 = vrot.slane %v905, 4
    %v907 = vadd.f32 %v905, %v906
    %v908 = vrot.slane %v907, 2
    %v909 = vadd.f32 %v907, %v908
    %v910 = vrot.slane %v909, 1
    %v911 = vadd.f32 %v909, %v910
    %v912 = vsel %vm116, %v890, 0.0
    %v913 = vrot.slane %v912, 4
    %v914 = vadd.f32 %v912, %v913
    %v915 = vrot.slane %v914, 2
    %v916 = vadd.f32 %v914, %v915
    %v917 = vrot.slane %v916, 1
    %v918 = vadd.f32 %v916, %v917
    %v919 = vsel %vm116, %v891, 0.0
    %v920 = vrot.slane %v919, 4
    %v921 = vadd.f32 %v919, %v920
    %v922 = vrot.slane %v921, 2
    %v923 = vadd.f32 %v921, %v922
    %v924 = vrot.slane %v923, 1
    %v925 = vadd.f32 %v923, %v924
    %v926 = vsel %vm116, %v892, 0.0
    %v927 = vrot.slane %v926, 4
    %v928 = vadd.f32 %v926, %v927
    %v929 = vrot.slane %v928, 2
    %v930 = vadd.f32 %v928, %v929
    %v931 = vrot.slane %v930, 1
    %v932 = vadd.f32 %v930, %v931
    %v933 = vsel %vm116, %v893, 0.0
    %v934 = vrot.slane %v933, 4
    %v935 = vadd.f32 %v933, %v934
    %v936 = vrot.slane %v935, 2
    %v937 = vadd.f32 %v935, %v936
    %v938 = vrot.slane %v937, 1
    %v939 = vadd.f32 %v937, %v938
    %v940 = vsel %vm116, %v894, 0.0
    %v941 = vrot.slane %v940, 4
    %v942 = vadd.f32 %v940, %v941
    %v943 = vrot.slane %v942, 2
    %v944 = vadd.f32 %v942, %v943
    %v945 = vrot.slane %v944, 1
    %v946 = vadd.f32 %v944, %v945
    %v947 = vsel %vm116, %v895, 0.0
    %v948 = vrot.slane %v947, 4
    %v949 = vadd.f32 %v947, %v948
    %v950 = vrot.slane %v949, 2
    %v951 = vadd.f32 %v949, %v950
    %v952 = vrot.slane %v951, 1
    %v953 = vadd.f32 %v951, %v952
    %v954 = vsel %vm116, %v896, 0.0
    %v955 = vrot.slane %v954, 4
    %v956 = vadd.f32 %v954, %v955
    %v957 = vrot.slane %v956, 2
    %v958 = vadd.f32 %v956, %v957
    %v959 = vrot.slane %v958, 1
    %v960 = vadd.f32 %v958, %v959
    %v961 = vsel %vm116, %v897, 0.0
    %v962 = vrot.slane %v961, 4
    %v963 = vadd.f32 %v961, %v962
    %v964 = vrot.slane %v963, 2
    %v965 = vadd.f32 %v963, %v964
    %v966 = vrot.slane %v965, 1
    %v967 = vadd.f32 %v965, %v966
    %v968 = vsel %vm116, %v898, 0.0
    %v969 = vrot.slane %v968, 4
    %v970 = vadd.f32 %v968, %v969
    %v971 = vrot.slane %v970, 2
    %v972 = vadd.f32 %v970, %v971
    %v973 = vrot.slane %v972, 1
    %v974 = vadd.f32 %v972, %v973
    %v975 = vsel %vm116, %v899, 0.0
    %v976 = vrot.slane %v975, 4
    %v977 = vadd.f32 %v975, %v976
    %v978 = vrot.slane %v977, 2
    %v979 = vadd.f32 %v977, %v978
    %v980 = vrot.slane %v979, 1
    %v981 = vadd.f32 %v979, %v980
    %v982 = vsel %vm116, %v900, 0.0
    %v983 = vrot.slane %v982, 4
    %v984 = vadd.f32 %v982, %v983
    %v985 = vrot.slane %v984, 2
    %v986 = vadd.f32 %v984, %v985
    %v987 = vrot.slane %v986, 1
    %v988 = vadd.f32 %v986, %v987
    %v989 = vsel %vm116, %v901, 0.0
    %v990 = vrot.slane %v989, 4
    %v991 = vadd.f32 %v989, %v990
    %v992 = vrot.slane %v991, 2
    %v993 = vadd.f32 %v991, %v992
    %v994 = vrot.slane %v993, 1
    %v995 = vadd.f32 %v993, %v994
    %v996 = vsel %vm116, %v902, 0.0
    %v997 = vrot.slane %v996, 4
    %v998 = vadd.f32 %v996, %v997
    %v999 = vrot.slane %v998, 2
    %v1000 = vadd.f32 %v998, %v999
    %v1001 = vrot.slane %v1000, 1
    %v1002 = vadd.f32 %v1000, %v1001
    %v1003 = vsel %vm116, %v903, 0.0
    %v1004 = vrot.slane %v1003, 4
    %v1005 = vadd.f32 %v1003, %v1004
    %v1006 = vrot.slane %v1005, 2
    %v1007 = vadd.f32 %v1005, %v1006
    %v1008 = vrot.slane %v1007, 1
    %v1009 = vadd.f32 %v1007, %v1008
    %v1010 = vsel %vm116, %v904, 0.0
    %v1011 = vrot.slane %v1010, 4
    %v1012 = vadd.f32 %v1010, %v1011
    %v1013 = vrot.slane %v1012, 2
    %v1014 = vadd.f32 %v1012, %v1013
    %v1015 = vrot.slane %v1014, 1
    %v1016 = vadd.f32 %v1014, %v1015
    %v1017 = vld [vmem:[#allocation10] sm:$0xff]
    %v1018 = vld [vmem:[%s10] sm:$0x1]
    %v1020 = vlaneseq
    %v1021 = vshrl.u32 %v1020, 7
    %v1022 = vsub.s32 0, %v1021
    %v1023 = vrot.slane %v1018, %v1022
    %vm1041 = vcmask 1041409
    %v1042 = vsel %vm1041, %v918, %v911
    %vm1043 = vcmask 1042434
    %v1044 = vsel %vm1043, %v925, %v1042
    %vm1045 = vcmask 1043459
    %v1046 = vsel %vm1045, %v932, %v1044
    %vm1047 = vcmask 1044484
    %v1048 = vsel %vm1047, %v939, %v1046
    %vm1049 = vcmask 1045509
    %v1050 = vsel %vm1049, %v946, %v1048
    %vm1051 = vcmask 1046534
    %v1052 = vsel %vm1051, %v953, %v1050
    %vm1053 = vcmask 1047559
    %v1054 = vsel %vm1053, %v960, %v1052
    %v1055 = vsel %vm1041, %v974, %v967
    %v1056 = vsel %vm1043, %v981, %v1055
    %v1057 = vsel %vm1045, %v988, %v1056
    %v1058 = vsel %vm1047, %v995, %v1057
    %v1059 = vsel %vm1049, %v1002, %v1058
    %v1060 = vsel %vm1051, %v1009, %v1059
    %v1061 = vsel %vm1053, %v1016, %v1060
    %v1062 = vsel %vm116, %v1054, 0
    %v1064 = vsel %vm116, %v1061, 0
    %v1067 = vsel %vm116, %v1017, 0
    %1069 = vmatprep.subr.mxu0 0.0
    %1070 = vmatpush1.xpose.msra.mxu0 %v1067
    %1071 = vmatprep.subr.mxu0 0.0
    %1072 = vmatpush1.xpose.msra.mxu0 0.0
    %1073 = vmatprep.subr.mxu0 0.0
    %1074 = vmatpush1.xpose.msra.mxu0 0.0
    %1075 = vmatprep.subr.mxu0 0.0
    %1076 = vmatpush1.xpose.msra.mxu0 0.0
    %1077 = vmatprep.subr.mxu0 0.0
    %1078 = vmatpush1.xpose.msra.mxu0 0.0
    %1079 = vmatprep.subr.mxu0 0.0
    %1080 = vmatpush1.xpose.msra.mxu0 0.0
    %1081 = vmatprep.subr.mxu0 0.0
    %1082 = vmatpush1.xpose.msra.mxu0 0.0
    %1083 = vmatprep.subr.mxu0 0.0
    %1084 = vmatpush1.xpose.msra.mxu0 0.0
    %1085 = vmatprep.subr.mxu0 0.0
    %1086 = vmatpush1.xpose.msra.mxu0 0.0
    %1087 = vmatprep.subr.mxu0 0.0
    %1088 = vmatpush1.xpose.msra.mxu0 0.0
    %1089 = vmatprep.subr.mxu0 0.0
    %1090 = vmatpush1.xpose.msra.mxu0 0.0
    %1091 = vmatprep.subr.mxu0 0.0
    %1092 = vmatpush1.xpose.msra.mxu0 0.0
    %1093 = vmatprep.subr.mxu0 0.0
    %1094 = vmatpush1.xpose.msra.mxu0 0.0
    %1095 = vmatprep.subr.mxu0 0.0
    %1096 = vmatpush1.xpose.msra.mxu0 0.0
    %1097 = vmatprep.subr.mxu0 0.0
    %1098 = vmatpush1.xpose.msra.mxu0 0.0
    %1099 = vmatprep.subr.mxu0 0.0
    %1100 = vmatpush1.xpose.msra.mxu0 0.0
    %1101 = vmatprep.subr.mxu0 0.0
    %1102 = vmatpush1.xpose.msra.mxu0 0.0
    %1103 = vmatprep.subr.mxu0 0.0
    %1104 = vmatpush1.xpose.msra.mxu0 0.0
    %1105 = vmatprep.subr.mxu0 0.0
    %1106 = vmatpush1.xpose.msra.mxu0 0.0
    %1107 = vmatprep.subr.mxu0 0.0
    %1108 = vmatpush1.xpose.msra.mxu0 0.0
    %1109 = vmatprep.subr.mxu0 0.0
    %1110 = vmatpush1.xpose.msra.mxu0 0.0
    %1111 = vmatprep.subr.mxu0 0.0
    %1112 = vmatpush1.xpose.msra.mxu0 0.0
    %1113 = vmatprep.subr.mxu0 0.0
    %1114 = vmatpush1.xpose.msra.mxu0 0.0
    %1115 = vmatprep.subr.mxu0 0.0
    %1116 = vmatpush1.xpose.msra.mxu0 0.0
    %1117 = vmatprep.subr.mxu0 0.0
    %1118 = vmatpush1.xpose.msra.mxu0 0.0
    %1119 = vmatprep.subr.mxu0 0.0
    %1120 = vmatpush1.xpose.msra.mxu0 0.0
    %1121 = vmatprep.subr.mxu0 0.0
    %1122 = vmatpush1.xpose.msra.mxu0 0.0
    %1123 = vmatprep.subr.mxu0 0.0
    %1124 = vmatpush1.xpose.msra.mxu0 0.0
    %1125 = vmatprep.subr.mxu0 0.0
    %1126 = vmatpush1.xpose.msra.mxu0 0.0
    %1127 = vmatprep.subr.mxu0 0.0
    %1128 = vmatpush1.xpose.msra.mxu0 0.0
    %1129 = vmatprep.subr.mxu0 0.0
    %1130 = vmatpush1.xpose.msra.mxu0 0.0
    %1131 = vmatprep.subr.mxu0 0.0
    %1132 = vmatpush1.xpose.msra.mxu0 0.0
    %1133 = vmatprep.mubr.f32.mxu0 0.0
    %1134 = vmatmul.mubr.f32.gmra.mrb[0].mxu0 %v1062
    %v1135 = vpop.f32.mrb[0].mxu0
    %v1136 = vadd.f32 %v1023, %v1135
    %v1137 = vpop.f32.mrb[0].mxu0
    %1138 = vmatprep.mubr.f32.mxu0 0.0
    %1139 = vmatmul.mubr.f32.gmra.mrb[0].mxu0 %v1064
    %v1140 = vpop.f32.mrb[0].mxu0
    %v1141 = vadd.f32 %v1023, %v1140
    %v1142 = vpop.f32.mrb[0].mxu0
    %1143 = vdwg.mxu0
    %v1144 = vld [vmem:[%s11] sm:$0x1]
    %v1146 = vlaneseq
    %v1147 = vshrl.u32 %v1146, 7
    %v1148 = vsub.s32 0, %v1147
    %v1149 = vrot.slane %v1144, %v1148
    %v1151 = vmul.f32 %v1136, %v1149
    %v1152 = vmul.f32 %v1141, %v1149
    %1153 = vst.msk [vmem:[#allocation11] sm:$0xff] %vm116, %v1151
    %1154 = vst.msk [vmem:[#allocation11 + $0x8] sm:$0xff] %vm116, %v1152
    // Predicated region
    $region70: #{tpu_custom_call.1} parent=1 // pred_check
      _
    $region71: #{tpu_custom_call.1} parent=1 // pred_check_branch
      %1156 = sbr.rel (0) target = $region73
    $region72: #{tpu_custom_call.1} parent=1 // pred_region
      %s1158 = ssub.s32 256, 256
      %1159 = vsyncadd [#allocation4], %s1158
      %s1160 = sshll.u32 [#allocation11], 4
      %s1161 = int_to_ptr.vmem [resolvable:$true] %s1160
      %1166 = dma.vmem_to_hbm [thread:$0]  %s1161, 256, %s12, [#allocation4], 128, 128, 8
    $region73: #{tpu_custom_call.1} parent=1 // pred_fallthru
      _
    // Predicated region
    $region74: #{tpu_custom_call.1} parent=1 // pred_check
      _
    $region75: #{tpu_custom_call.1} parent=1 // pred_check_branch
      %1168 = sbr.rel (0) target = $region77
    $region76: #{tpu_custom_call.1} parent=1 // pred_region
      %1169 = dma.done [#allocation4], 256
    $region77: #{tpu_custom_call.1} parent=1 // pred_fallthru
      _
    %1170 = vsyncpa [#allocation3], 1
    %1171 = vsyncpa [#allocation6], 1
    %1172 = vsyncpa [#allocation9], 1
    %1173 = vsyncpa [#allocation4], 1

</llo_original>
